<compile_context>
chip_gen: v7x
topology: tpu7x:2x2x1
jax: 0.10.0
libtpu: 0.0.40
codegen_flags: <defaults>
</compile_context>

<pallas_src>
import functools

import jax
import jax.numpy as jnp
from jax.experimental import pallas as pl
from jax.experimental.pallas import tpu as pltpu


def _conv_relu_kernel(x_ref, w_ref, b_ref, o_ref, xpad_ref, *,
                      NB, H, W, Cin, Cout, KH, KW, stride, pad, Ho, Wo):
    """One batch-block per grid step.

    x_ref   : (NB, H, W, Cin)          unpadded NHWC input block (f32)
    w_ref   : (KH*KW*Cin, Cout)        im2col weight matrix (bf16)
    b_ref   : (1, Cout)                bias (f32)
    o_ref   : (NB, Ho, Wo, Cout)       output block (f32)
    xpad_ref: (NB, H+2p, W+2p, Cin)    zero-padded VMEM scratch (f32)
    """
    # Zero-pad inside the kernel.  Scratch is tiny; re-zeroing every step keeps
    # the kernel correct under megacore "parallel" scheduling of the batch axis.
    if pad > 0:
        xpad_ref[...] = jnp.zeros_like(xpad_ref)
    xpad_ref[:, pad:pad + H, pad:pad + W, :] = x_ref[...]

    # Cast once to bf16 for the MXU; everything downstream of the dot is f32.
    xp = xpad_ref[...].astype(jnp.bfloat16)

    # im2col: fold all KH*KW taps into the K dimension -> one big matmul.
    taps = []
    for kh in range(KH):
        for kw in range(KW):
            if stride == 1:
                t = xp[:, kh:kh + Ho, kw:kw + Wo, :]
            else:
                t = jax.lax.slice(
                    xp, (0, kh, kw, 0),
                    (NB, kh + stride * (Ho - 1) + 1,
                     kw + stride * (Wo - 1) + 1, Cin),
                    (1, stride, stride, 1))
            taps.append(t)                           # (NB, Ho, Wo, Cin)
    patches = jnp.concatenate(taps, axis=-1)         # (NB, Ho, Wo, KH*KW*Cin)
    patches = patches.reshape(NB * Ho * Wo, KH * KW * Cin)

    # Single MXU matmul (bf16 in, f32 accumulate), accumulation in registers.
    acc = jnp.dot(patches, w_ref[...], preferred_element_type=jnp.float32)

    # Bias + ReLU in f32, single lane-dense write-back.
    y = jnp.maximum(acc + b_ref[...], 0.0)
    o_ref[...] = y.reshape(NB, Ho, Wo, Cout).astype(o_ref.dtype)


def _pick_batch_block(N, Ho, Wo, target_rows=256):
    """Smallest divisor of N giving >= target_rows matmul rows per grid step."""
    nb = 1
    for cand in range(1, N + 1):
        if N % cand == 0:
            nb = cand
            if cand * Ho * Wo >= target_rows:
                break
    return nb


def conv_relu(x_nchw, w_hwio, b, *, stride=1, padding=0):
    """Conv2d(weight=w_hwio, stride, padding, bias=b) + ReLU.

    x_nchw: (N, Cin, H, W) f32      (PyTorch layout)
    w_hwio: (KH, KW, Cin, Cout) f32
    b     : (Cout,) f32
    returns (N, Cout, Ho, Wo) f32   (PyTorch layout)
    """
    N, Cin, H, W = x_nchw.shape
    KH, KW, _, Cout = w_hwio.shape
    Ho = (H + 2 * padding - KH) // stride + 1
    Wo = (W + 2 * padding - KW) // stride + 1

    x = jnp.transpose(x_nchw, (0, 2, 3, 1)).astype(jnp.float32)          # NHWC
    w_mat = w_hwio.reshape(KH * KW * Cin, Cout).astype(jnp.bfloat16)     # im2col
    b_row = b.reshape(1, Cout).astype(jnp.float32)

    NB = _pick_batch_block(N, Ho, Wo)
    kernel = functools.partial(
        _conv_relu_kernel, NB=NB, H=H, W=W, Cin=Cin, Cout=Cout,
        KH=KH, KW=KW, stride=stride, pad=padding, Ho=Ho, Wo=Wo)

    y = pl.pallas_call(
        kernel,
        out_shape=jax.ShapeDtypeStruct((N, Ho, Wo, Cout), jnp.float32),
        grid=(N // NB,),
        in_specs=[
            pl.BlockSpec((NB, H, W, Cin), lambda n: (n, 0, 0, 0)),
            pl.BlockSpec((KH * KW * Cin, Cout), lambda n: (0, 0)),
            pl.BlockSpec((1, Cout), lambda n: (0, 0)),
        ],
        out_specs=pl.BlockSpec((NB, Ho, Wo, Cout), lambda n: (n, 0, 0, 0)),
        scratch_shapes=[
            pltpu.VMEM((NB, H + 2 * padding, W + 2 * padding, Cin),
                       jnp.float32),
        ],
        compiler_params=pltpu.CompilerParams(
            dimension_semantics=("parallel",)),
    )(x, w_mat, b_row)

    return jnp.transpose(y, (0, 3, 1, 2))   # back to NCHW (PyTorch layout)


if __name__ == "__main__":
    key = jax.random.PRNGKey(0)
    k_x, k_w, k_b = jax.random.split(key, 3)

    # ConvReLU(in_channels=4, out_channels=128, kernel_size=3, stride=1,
    #          padding=1, bias=True) on a (2, 4, 16, 16) input.
    N, Cin, H, W = 2, 4, 16, 16
    Cout, K, stride, padding = 128, 3, 1, 1

    x = jax.random.normal(k_x, (N, Cin, H, W), jnp.float32)
    # TODO(synk): weights are synthetic (Kaiming-like scale), not PyTorch's exact default init.
    w = jax.random.normal(k_w, (K, K, Cin, Cout), jnp.float32) * (2.0 / (Cin * K * K)) ** 0.5
    b = 0.1 * jax.random.normal(k_b, (Cout,), jnp.float32)

    out = conv_relu(x, w, b, stride=stride, padding=padding)
    out = jax.block_until_ready(out)

    # Pure-JAX f32 reference (kernel feeds the MXU bf16, hence loose tolerance).
    x_nhwc = jnp.transpose(x, (0, 2, 3, 1))
    ref = jax.lax.conv_general_dilated(
        x_nhwc, w, window_strides=(stride, stride),
        padding=((padding, padding), (padding, padding)),
        dimension_numbers=("NHWC", "HWIO", "NHWC"))
    ref = jnp.maximum(ref + b, 0.0)
    ref = jnp.transpose(ref, (0, 3, 1, 2))

    assert out.shape == (N, Cout, H, W), out.shape
    assert bool(jnp.all(jnp.isfinite(out)))
    assert bool(jnp.allclose(out, ref, atol=1e-1, rtol=1e-1)), \
        float(jnp.max(jnp.abs(out - ref)))
    print("KERNEL_OK")
</pallas_src>

<mosaic_0001>
module attributes {stable_mosaic.version = 11 : i64} {
  func.func @_conv_relu_kernel(%arg0: i32, %arg1: memref<1x16x16x4xf32, #tpu.memory_space<vmem>>, %arg2: memref<36x128xbf16, #tpu.memory_space<vmem>>, %arg3: memref<1x128xf32, #tpu.memory_space<vmem>>, %arg4: memref<1x16x16x128xf32, #tpu.memory_space<vmem>>, %arg5: memref<1x18x18x4xf32, #tpu.memory_space<vmem>>) attributes {dimension_semantics = [#tpu.dimension_semantics<parallel>], iteration_bounds = array<i64: 2>, scalar_prefetch = 0 : i64, scratch_operands = 1 : i64, tpu.core_type = #tpu.core_type<tc>, window_params = [{transform_indices = @transform_0, window_bounds = array<i64: 1, 16, 16, 4>}, {pipeline_mode = #tpu.pipeline_mode<synchronous>, transform_indices = @transform_1, window_bounds = array<i64: 36, 128>}, {pipeline_mode = #tpu.pipeline_mode<synchronous>, transform_indices = @transform_2, window_bounds = array<i64: 1, 128>}, {transform_indices = @transform_3, window_bounds = array<i64: 1, 16, 16, 128>}]} {
    %cst = arith.constant 0.000000e+00 : f32
    %0 = vector.broadcast %cst : f32 to vector<1x18x18x4xf32>
    %c0 = arith.constant 0 : index
    %c0_0 = arith.constant 0 : index
    %c0_1 = arith.constant 0 : index
    %c0_2 = arith.constant 0 : index
    %1 = vector.load %arg5[%c0, %c0_0, %c0_1, %c0_2] : memref<1x18x18x4xf32, #tpu.memory_space<vmem>>, vector<1x18x18x4xf32>
    tpu.vector_store %arg5[%c0, %c0_0, %c0_1, %c0_2], %0 {strides = array<i32>} : memref<1x18x18x4xf32, #tpu.memory_space<vmem>>, vector<1x18x18x4xf32>,
    %c0_3 = arith.constant 0 : index
    %c0_4 = arith.constant 0 : index
    %c0_5 = arith.constant 0 : index
    %c0_6 = arith.constant 0 : index
    %2 = vector.load %arg1[%c0_3, %c0_4, %c0_5, %c0_6] : memref<1x16x16x4xf32, #tpu.memory_space<vmem>>, vector<1x16x16x4xf32>
    %c0_7 = arith.constant 0 : index
    %c1 = arith.constant 1 : index
    %c1_8 = arith.constant 1 : index
    %c0_9 = arith.constant 0 : index
    %3 = vector.load %arg5[%c0_7, %c1, %c1_8, %c0_9] : memref<1x18x18x4xf32, #tpu.memory_space<vmem>>, vector<1x16x16x4xf32>
    tpu.vector_store %arg5[%c0_7, %c1, %c1_8, %c0_9], %2 {strides = array<i32>} : memref<1x18x18x4xf32, #tpu.memory_space<vmem>>, vector<1x16x16x4xf32>,
    %c0_10 = arith.constant 0 : index
    %c0_11 = arith.constant 0 : index
    %c0_12 = arith.constant 0 : index
    %c0_13 = arith.constant 0 : index
    %4 = vector.load %arg5[%c0_10, %c0_11, %c0_12, %c0_13] : memref<1x18x18x4xf32, #tpu.memory_space<vmem>>, vector<1x18x18x4xf32>
    %5 = arith.truncf %4 : vector<1x18x18x4xf32> to vector<1x18x18x4xbf16>
    %6 = vector.extract_strided_slice %5 {offsets = [0, 0, 0, 0], sizes = [1, 16, 16, 4], strides = [1, 1, 1, 1]} : vector<1x18x18x4xbf16> to vector<1x16x16x4xbf16>
    %7 = vector.extract_strided_slice %5 {offsets = [0, 0, 1, 0], sizes = [1, 16, 16, 4], strides = [1, 1, 1, 1]} : vector<1x18x18x4xbf16> to vector<1x16x16x4xbf16>
    %8 = vector.extract_strided_slice %5 {offsets = [0, 0, 2, 0], sizes = [1, 16, 16, 4], strides = [1, 1, 1, 1]} : vector<1x18x18x4xbf16> to vector<1x16x16x4xbf16>
    %9 = vector.extract_strided_slice %5 {offsets = [0, 1, 0, 0], sizes = [1, 16, 16, 4], strides = [1, 1, 1, 1]} : vector<1x18x18x4xbf16> to vector<1x16x16x4xbf16>
    %10 = vector.extract_strided_slice %5 {offsets = [0, 1, 1, 0], sizes = [1, 16, 16, 4], strides = [1, 1, 1, 1]} : vector<1x18x18x4xbf16> to vector<1x16x16x4xbf16>
    %11 = vector.extract_strided_slice %5 {offsets = [0, 1, 2, 0], sizes = [1, 16, 16, 4], strides = [1, 1, 1, 1]} : vector<1x18x18x4xbf16> to vector<1x16x16x4xbf16>
    %12 = vector.extract_strided_slice %5 {offsets = [0, 2, 0, 0], sizes = [1, 16, 16, 4], strides = [1, 1, 1, 1]} : vector<1x18x18x4xbf16> to vector<1x16x16x4xbf16>
    %13 = vector.extract_strided_slice %5 {offsets = [0, 2, 1, 0], sizes = [1, 16, 16, 4], strides = [1, 1, 1, 1]} : vector<1x18x18x4xbf16> to vector<1x16x16x4xbf16>
    %14 = vector.extract_strided_slice %5 {offsets = [0, 2, 2, 0], sizes = [1, 16, 16, 4], strides = [1, 1, 1, 1]} : vector<1x18x18x4xbf16> to vector<1x16x16x4xbf16>
    %15 = tpu.concatenate %6, %7, %8, %9, %10, %11, %12, %13, %14 in 3 : vector<1x16x16x4xbf16>, vector<1x16x16x4xbf16>, vector<1x16x16x4xbf16>, vector<1x16x16x4xbf16>, vector<1x16x16x4xbf16>, vector<1x16x16x4xbf16>, vector<1x16x16x4xbf16>, vector<1x16x16x4xbf16>, vector<1x16x16x4xbf16> -> vector<1x16x16x36xbf16>
    %16 = vector.shape_cast %15 : vector<1x16x16x36xbf16> to vector<256x36xbf16>
    %c0_14 = arith.constant 0 : index
    %c0_15 = arith.constant 0 : index
    %17 = vector.load %arg2[%c0_14, %c0_15] : memref<36x128xbf16, #tpu.memory_space<vmem>>, vector<36x128xbf16>
    %cst_16 = arith.constant dense<0.000000e+00> : vector<256x128xf32>
    %18 = tpu.matmul %16, %17, %cst_16 {dimension_numbers = #tpu.dot_dimension_numbers<[1], [0], [0], [1], [0, 0, 1, 1], [], []>} : vector<256x36xbf16>, vector<36x128xbf16>, vector<256x128xf32> -> vector<256x128xf32>
    %c0_17 = arith.constant 0 : index
    %c0_18 = arith.constant 0 : index
    %19 = vector.load %arg3[%c0_17, %c0_18] : memref<1x128xf32, #tpu.memory_space<vmem>>, vector<1x128xf32>
    %20 = vector.broadcast %19 : vector<1x128xf32> to vector<256x128xf32>
    %21 = arith.addf %18, %20 : vector<256x128xf32>
    %cst_19 = arith.constant 0.000000e+00 : f32
    %22 = vector.broadcast %cst_19 : f32 to vector<256x128xf32>
    %23 = arith.maximumf %21, %22 : vector<256x128xf32>
    %24 = vector.shape_cast %23 : vector<256x128xf32> to vector<1x16x16x128xf32>
    %c0_20 = arith.constant 0 : index
    %c0_21 = arith.constant 0 : index
    %c0_22 = arith.constant 0 : index
    %c0_23 = arith.constant 0 : index
    %25 = vector.load %arg4[%c0_20, %c0_21, %c0_22, %c0_23] : memref<1x16x16x128xf32, #tpu.memory_space<vmem>>, vector<1x16x16x128xf32>
    tpu.vector_store %arg4[%c0_20, %c0_21, %c0_22, %c0_23], %24 {strides = array<i32>} : memref<1x16x16x128xf32, #tpu.memory_space<vmem>>, vector<1x16x16x128xf32>,
    return
  }
  func.func @transform_0(%arg0: i32) -> (i32, i32, i32, i32) {
    %c0_i32 = arith.constant 0 : i32
    %c0_i32_0 = arith.constant 0 : i32
    %c0_i32_1 = arith.constant 0 : i32
    %c0_i32_2 = arith.constant 0 : i32
    return %arg0, %c0_i32, %c0_i32_0, %c0_i32_1 : i32, i32, i32, i32
  }
  func.func @transform_1(%arg0: i32) -> (i32, i32) {
    %c0_i32 = arith.constant 0 : i32
    %c0_i32_0 = arith.constant 0 : i32
    %c0_i32_1 = arith.constant 0 : i32
    return %c0_i32, %c0_i32_0 : i32, i32
  }
  func.func @transform_2(%arg0: i32) -> (i32, i32) {
    %c0_i32 = arith.constant 0 : i32
    %c0_i32_0 = arith.constant 0 : i32
    %c0_i32_1 = arith.constant 0 : i32
    return %c0_i32, %c0_i32_0 : i32, i32
  }
  func.func @transform_3(%arg0: i32) -> (i32, i32, i32, i32) {
    %c0_i32 = arith.constant 0 : i32
    %c0_i32_0 = arith.constant 0 : i32
    %c0_i32_1 = arith.constant 0 : i32
    %c0_i32_2 = arith.constant 0 : i32
    return %arg0, %c0_i32, %c0_i32_0, %c0_i32_1 : i32, i32, i32, i32
  }
}

</mosaic_0001>

<llo_original>
// kernel: tpu_custom_call.1
$region0: #{tpu_custom_call.1}
  #allocation0 [shape = 'u32[]', space=smem, size = 0x4, offset = 0x4, fixed_abs, tag = 'smem constant byte address 0x4 - core index']
  #allocation1 [shape = 'u32[144,128]{1,0:T(1,128)}', space=vmem, size = 0x12000, scoped, tag = 'internal scratch']
  #allocation2 [shape = 'f32[1,18,18,4]{3,2,1,0:T(8,128)}', space=vmem, size = 0x36000, scoped, tag = 'scratch operand']
  %s0 = inlined_call_operand.vmem [shape: f32[2,16,16,4], index: 0, kind: input, shape index: {}]
  %s1 = inlined_call_operand.vmem [shape: bf16[36,128], index: 1, kind: input, shape index: {}]
  %s2 = inlined_call_operand.vmem [shape: f32[1,128], index: 2, kind: input, shape index: {}]
  %s3 = inlined_call_operand.hbm [shape: f32[2,16,16,128], index: 3, kind: output, shape index: {}]
  %s4 = sld [smem:[#allocation0]]
  $region45: #{tpu_custom_call.1} parent=0
    _
  %s6 = ssub.s32 1, %s4
  %s7 = scalar_select 0, %s6, %s4
  $region1: #{tpu_custom_call.1} parent=0
    #allocation3 [shape = 'u8[262144]{0}', space=vmem, size = 0x40000, scoped, tag = 'output window, operand 0']
    #allocation4 [shape = 's32[2]{0}', space=sflag, size = 0x8, scoped, tag = 'scoped memory for tpu_custom_call.1']
    %8 = vsyncpa [#allocation4], 0
    %s9 = scalar_lea.sflag [#allocation4], 1
    %10 = vsyncpa %s9, 0
    loop: start=0, step=1, limit=4
    $region2: #{tpu_custom_call.1} parent=1 // loop_pre_header
      _
    $region3: #{tpu_custom_call.1} parent=1 // loop_header
      %s12 = sphi 0, %s16
      %p13 = scmp.ge.s32.totalorder %s12, 4
      %s22 = sphi 0, %s24
      %s25 = sphi 0, %s22
      %s26 = sphi 0, %s25
      %s42 = sphi 0, %s26
      %s46 = sphi 0, %s46
      %s48 = sphi 0, %s46
      %s49 = sphi 0, %s48
      %s63 = sphi 0, %s49
      %s67 = sphi 0, %s67
      %s69 = sphi 0, %s67
      %s70 = sphi 0, %s69
      %s84 = sphi 0, %s70
      %s90 = sphi 0, %s92
      %s93 = sphi 0, %s90
      %s94 = sphi 0, %s93
      %s110 = sphi 0, %s94
    $region4: #{tpu_custom_call.1} parent=1 // loop_header_branch
      %15 = sbr.rel (%p13) target = $region8
    $region5: #{tpu_custom_call.1} parent=1 // loop_body
      %s17 = ssub.s32 %s12, 1
      %s18 = ssub.s32 %s12, 2
      %s19 = sadd.s32 %s12, 1
      %s20 = ssub.s32 %s12, %s19
      %p21 = scmp.eq.s32.totalorder %s20, 0
      %s23 = sadd.s32 %s22, 1
      %s24 = scalar_select %p21, %s22, %s23
      %p27 = pneg %p21
      %p28 = scmp.eq.s32.totalorder %s12, 1
      %p29 = por %p27, %p28
      %p30 = scmp.ne.s32.totalorder %s22, %s25
      %p31 = scmp.eq.s32.totalorder %s12, 0
      %p32 = por %p30, %p31
      %p33 = scmp.ne.s32.totalorder %s22, %s25
      %p34 = scmp.eq.s32.totalorder %s17, 1
      %p35 = por %p33, %p34
      %p36 = scmp.ne.s32.totalorder %s25, %s26
      %p37 = scmp.eq.s32.totalorder %s17, 0
      %p38 = por %p36, %p37
      %p39 = scmp.ne.s32.totalorder %s25, %s26
      %p40 = scmp.eq.s32.totalorder %s18, 1
      %p41 = por %p39, %p40
      %p43 = scmp.ne.s32.totalorder %s26, %s42
      %p44 = scmp.eq.s32.totalorder %s18, 0
      %p45 = por %p43, %p44
      %s47 = sadd.s32 %s46, 1
      %p50 = scmp.eq.s32.totalorder %s12, 1
      %p51 = scmp.ne.s32.totalorder %s46, %s48
      %p52 = scmp.eq.s32.totalorder %s12, 0
      %p53 = por %p51, %p52
      %p54 = scmp.ne.s32.totalorder %s46, %s48
      %p55 = scmp.eq.s32.totalorder %s17, 1
      %p56 = por %p54, %p55
      %p57 = scmp.ne.s32.totalorder %s48, %s49
      %p58 = scmp.eq.s32.totalorder %s17, 0
      %p59 = por %p57, %p58
      %p60 = scmp.ne.s32.totalorder %s48, %s49
      %p61 = scmp.eq.s32.totalorder %s18, 1
      %p62 = por %p60, %p61
      %p64 = scmp.ne.s32.totalorder %s49, %s63
      %p65 = scmp.eq.s32.totalorder %s18, 0
      %p66 = por %p64, %p65
      %s68 = sadd.s32 %s67, 1
      %p71 = scmp.eq.s32.totalorder %s12, 1
      %p72 = scmp.ne.s32.totalorder %s67, %s69
      %p73 = scmp.eq.s32.totalorder %s12, 0
      %p74 = por %p72, %p73
      %p75 = scmp.ne.s32.totalorder %s67, %s69
      %p76 = scmp.eq.s32.totalorder %s17, 1
      %p77 = por %p75, %p76
      %p78 = scmp.ne.s32.totalorder %s69, %s70
      %p79 = scmp.eq.s32.totalorder %s17, 0
      %p80 = por %p78, %p79
      %p81 = scmp.ne.s32.totalorder %s69, %s70
      %p82 = scmp.eq.s32.totalorder %s18, 1
      %p83 = por %p81, %p82
      %p85 = scmp.ne.s32.totalorder %s70, %s84
      %p86 = scmp.eq.s32.totalorder %s18, 0
      %p87 = por %p85, %p86
      %s88 = ssub.s32 %s12, %s19
      %p89 = scmp.eq.s32.totalorder %s88, 0
      %s91 = sadd.s32 %s90, 1
      %s92 = scalar_select %p89, %s90, %s91
      %p95 = pneg %p89
      %p96 = scmp.eq.s32.totalorder %s12, 1
      %p97 = por %p95, %p96
      %p98 = scmp.ne.s32.totalorder %s90, %s93
      %p99 = scmp.eq.s32.totalorder %s12, 0
      %p100 = por %p98, %p99
      %p101 = scmp.ne.s32.totalorder %s90, %s93
      %p102 = scmp.eq.s32.totalorder %s17, 1
      %p103 = por %p101, %p102
      %p104 = scmp.ne.s32.totalorder %s93, %s94
      %p105 = scmp.eq.s32.totalorder %s17, 0
      %p106 = por %p104, %p105
      %p107 = scmp.ne.s32.totalorder %s93, %s94
      %p108 = scmp.eq.s32.totalorder %s18, 1
      %p109 = por %p107, %p108
      %p111 = scmp.ne.s32.totalorder %s94, %s110
      %p112 = scmp.eq.s32.totalorder %s18, 0
      %p113 = por %p111, %p112
      %p114 = scmp.le.s32.totalorder 1, %s12
      %p115 = scmp.lt.s32.totalorder %s12, 3
      %p116 = pnand %p114, %p115
      %p117 = pneg %p116
      // Predicated region
      $region9: #{tpu_custom_call.1} parent=5 // pred_check
        _
      $region10: #{tpu_custom_call.1} parent=5 // pred_check_branch
        %119 = sbr.rel (%p116) target = $region12
      $region11: #{tpu_custom_call.1} parent=5 // pred_region
        %s120 = ssub.s32 %s12, 1
        // Predicated region
        $region13: #{tpu_custom_call.1} parent=11 // pred_check
          %p121 = pneg %p59
        $region14: #{tpu_custom_call.1} parent=11 // pred_check_branch
          %123 = sbr.rel (%p121) target = $region16
        $region15: #{tpu_custom_call.1} parent=11 // pred_region
          _
        $region16: #{tpu_custom_call.1} parent=11 // pred_fallthru
          _
        // Predicated region
        $region17: #{tpu_custom_call.1} parent=11 // pred_check
          %p124 = pneg %p80
        $region18: #{tpu_custom_call.1} parent=11 // pred_check_branch
          %126 = sbr.rel (%p124) target = $region20
        $region19: #{tpu_custom_call.1} parent=11 // pred_region
          _
        $region20: #{tpu_custom_call.1} parent=11 // pred_fallthru
          _
      $region12: #{tpu_custom_call.1} parent=5 // pred_fallthru
        _
      %p127 = scmp.lt.s32.totalorder %s12, 2
      // Predicated region
      $region21: #{tpu_custom_call.1} parent=5 // pred_check
        %p128 = pneg %p127
      $region22: #{tpu_custom_call.1} parent=5 // pred_check_branch
        %130 = sbr.rel (%p128) target = $region24
      $region23: #{tpu_custom_call.1} parent=5 // pred_region
        // Predicated region
        $region25: #{tpu_custom_call.1} parent=23 // pred_check
          %p131 = pneg %p32
        $region26: #{tpu_custom_call.1} parent=23 // pred_check_branch
          %133 = sbr.rel (%p131) target = $region28
        $region27: #{tpu_custom_call.1} parent=23 // pred_region
          %p134 = scmp.lt.s32.totalorder %s12, 1
          %s135 = scalar_select %p134, %s12, 1
          %s136 = smul.addr %s135, 32
          %s137 = smul.addr %s136, 8
          %s138 = scalar_lea.vmem %s0, %s137
        $region28: #{tpu_custom_call.1} parent=23 // pred_fallthru
          _
      $region24: #{tpu_custom_call.1} parent=5 // pred_fallthru
        _
      %p139 = scmp.le.s32.totalorder 1, %s12
      %p140 = scmp.lt.s32.totalorder %s12, 3
      %p141 = pnand %p139, %p140
      %p142 = pneg %p141
      // Predicated region
      $region29: #{tpu_custom_call.1} parent=5 // pred_check
        _
      $region30: #{tpu_custom_call.1} parent=5 // pred_check_branch
        %144 = sbr.rel (%p141) target = $region32
      $region31: #{tpu_custom_call.1} parent=5 // pred_region
        %s145 = ssub.s32 %s12, 1
        %p146 = scmp.lt.s32.totalorder %s17, 1
        %s147 = scalar_select %p146, %s17, 1
        %s148 = smul.addr %s147, 32
        %s149 = smul.addr %s148, 8
        %s150 = scalar_lea.vmem %s0, %s149
        %p151 = pneg %p38
        %p152 = pneg %p35
        %p153 = pneg %p59
        %p154 = pneg %p56
        %p155 = pneg %p80
        %p156 = pneg %p77
        %p157 = pneg %p106
        %p158 = pneg %p103
        %s159 = sand.u32 %s93, 1
        %s160 = scalar_lea.sflag [#allocation4], %s159
        %s161 = sand.u32 %s93, 1
        %s162 = smul.addr %s161, 256
        %s163 = scalar_lea.vmem [#allocation3], %s162
        %p164 = scmp.lt.s32.totalorder %s17, 1
        %s165 = scalar_select %p164, %s17, 1
        %s166 = smul.addr %s165, 32
        %s167 = smul.addr %s166, 8
        %s168 = scalar_lea.vmem %s0, %s167
        %vm170 = vcmask 31744
        %171 = vst.msk [vmem:[#allocation2] sm:$0xff] %vm170, 0.0
        %172 = vst.msk [vmem:[#allocation2 + $0x8] sm:$0xff] %vm170, 0.0
        %vm173 = vcmask 25600
        %174 = vst.msk [vmem:[#allocation2 + $0x10] sm:$0x3] %vm173, 0.0
        %175 = vst.msk [vmem:[#allocation2 + $0x18] sm:$0xff] %vm170, 0.0
        %176 = vst.msk [vmem:[#allocation2 + $0x20] sm:$0xff] %vm170, 0.0
        %177 = vst.msk [vmem:[#allocation2 + $0x28] sm:$0x3] %vm173, 0.0
        %178 = vst.msk [vmem:[#allocation2 + $0x30] sm:$0xff] %vm170, 0.0
        %179 = vst.msk [vmem:[#allocation2 + $0x38] sm:$0xff] %vm170, 0.0
        %180 = vst.msk [vmem:[#allocation2 + $0x40] sm:$0x3] %vm173, 0.0
        %181 = vst.msk [vmem:[#allocation2 + $0x48] sm:$0xff] %vm170, 0.0
        %182 = vst.msk [vmem:[#allocation2 + $0x50] sm:$0xff] %vm170, 0.0
        %183 = vst.msk [vmem:[#allocation2 + $0x58] sm:$0x3] %vm173, 0.0
        %184 = vst.msk [vmem:[#allocation2 + $0x60] sm:$0xff] %vm170, 0.0
        %185 = vst.msk [vmem:[#allocation2 + $0x68] sm:$0xff] %vm170, 0.0
        %186 = vst.msk [vmem:[#allocation2 + $0x70] sm:$0x3] %vm173, 0.0
        %187 = vst.msk [vmem:[#allocation2 + $0x78] sm:$0xff] %vm170, 0.0
        %188 = vst.msk [vmem:[#allocation2 + $0x80] sm:$0xff] %vm170, 0.0
        %189 = vst.msk [vmem:[#allocation2 + $0x88] sm:$0x3] %vm173, 0.0
        %190 = vst.msk [vmem:[#allocation2 + $0x90] sm:$0xff] %vm170, 0.0
        %191 = vst.msk [vmem:[#allocation2 + $0x98] sm:$0xff] %vm170, 0.0
        %192 = vst.msk [vmem:[#allocation2 + $0xa0] sm:$0x3] %vm173, 0.0
        %193 = vst.msk [vmem:[#allocation2 + $0xa8] sm:$0xff] %vm170, 0.0
        %194 = vst.msk [vmem:[#allocation2 + $0xb0] sm:$0xff] %vm170, 0.0
        %195 = vst.msk [vmem:[#allocation2 + $0xb8] sm:$0x3] %vm173, 0.0
        %196 = vst.msk [vmem:[#allocation2 + $0xc0] sm:$0xff] %vm170, 0.0
        %197 = vst.msk [vmem:[#allocation2 + $0xc8] sm:$0xff] %vm170, 0.0
        %198 = vst.msk [vmem:[#allocation2 + $0xd0] sm:$0x3] %vm173, 0.0
        %199 = vst.msk [vmem:[#allocation2 + $0xd8] sm:$0xff] %vm170, 0.0
        %200 = vst.msk [vmem:[#allocation2 + $0xe0] sm:$0xff] %vm170, 0.0
        %201 = vst.msk [vmem:[#allocation2 + $0xe8] sm:$0x3] %vm173, 0.0
        %202 = vst.msk [vmem:[#allocation2 + $0xf0] sm:$0xff] %vm170, 0.0
        %203 = vst.msk [vmem:[#allocation2 + $0xf8] sm:$0xff] %vm170, 0.0
        %204 = vst.msk [vmem:[#allocation2 + $0x100] sm:$0x3] %vm173, 0.0
        %205 = vst.msk [vmem:[#allocation2 + $0x108] sm:$0xff] %vm170, 0.0
        %206 = vst.msk [vmem:[#allocation2 + $0x110] sm:$0xff] %vm170, 0.0
        %207 = vst.msk [vmem:[#allocation2 + $0x118] sm:$0x3] %vm173, 0.0
        %208 = vst.msk [vmem:[#allocation2 + $0x120] sm:$0xff] %vm170, 0.0
        %209 = vst.msk [vmem:[#allocation2 + $0x128] sm:$0xff] %vm170, 0.0
        %210 = vst.msk [vmem:[#allocation2 + $0x130] sm:$0x3] %vm173, 0.0
        %211 = vst.msk [vmem:[#allocation2 + $0x138] sm:$0xff] %vm170, 0.0
        %212 = vst.msk [vmem:[#allocation2 + $0x140] sm:$0xff] %vm170, 0.0
        %213 = vst.msk [vmem:[#allocation2 + $0x148] sm:$0x3] %vm173, 0.0
        %214 = vst.msk [vmem:[#allocation2 + $0x150] sm:$0xff] %vm170, 0.0
        %215 = vst.msk [vmem:[#allocation2 + $0x158] sm:$0xff] %vm170, 0.0
        %216 = vst.msk [vmem:[#allocation2 + $0x160] sm:$0x3] %vm173, 0.0
        %217 = vst.msk [vmem:[#allocation2 + $0x168] sm:$0xff] %vm170, 0.0
        %218 = vst.msk [vmem:[#allocation2 + $0x170] sm:$0xff] %vm170, 0.0
        %219 = vst.msk [vmem:[#allocation2 + $0x178] sm:$0x3] %vm173, 0.0
        %220 = vst.msk [vmem:[#allocation2 + $0x180] sm:$0xff] %vm170, 0.0
        %221 = vst.msk [vmem:[#allocation2 + $0x188] sm:$0xff] %vm170, 0.0
        %222 = vst.msk [vmem:[#allocation2 + $0x190] sm:$0x3] %vm173, 0.0
        %223 = vst.msk [vmem:[#allocation2 + $0x198] sm:$0xff] %vm170, 0.0
        %224 = vst.msk [vmem:[#allocation2 + $0x1a0] sm:$0xff] %vm170, 0.0
        %225 = vst.msk [vmem:[#allocation2 + $0x1a8] sm:$0x3] %vm173, 0.0
        %v226 = vld [vmem:[%s168] sm:$0xff]
        %v227 = vld [vmem:[%s168 + $0x8] sm:$0xff]
        %v228 = vld [vmem:[%s168 + $0x10] sm:$0xff]
        %v229 = vld [vmem:[%s168 + $0x18] sm:$0xff]
        %v230 = vld [vmem:[%s168 + $0x20] sm:$0xff]
        %v231 = vld [vmem:[%s168 + $0x28] sm:$0xff]
        %v232 = vld [vmem:[%s168 + $0x30] sm:$0xff]
        %v233 = vld [vmem:[%s168 + $0x38] sm:$0xff]
        %v234 = vld [vmem:[%s168 + $0x40] sm:$0xff]
        %v235 = vld [vmem:[%s168 + $0x48] sm:$0xff]
        %v236 = vld [vmem:[%s168 + $0x50] sm:$0xff]
        %v237 = vld [vmem:[%s168 + $0x58] sm:$0xff]
        %v238 = vld [vmem:[%s168 + $0x60] sm:$0xff]
        %v239 = vld [vmem:[%s168 + $0x68] sm:$0xff]
        %v240 = vld [vmem:[%s168 + $0x70] sm:$0xff]
        %v241 = vld [vmem:[%s168 + $0x78] sm:$0xff]
        %v242 = vld [vmem:[%s168 + $0x80] sm:$0xff]
        %v243 = vld [vmem:[%s168 + $0x88] sm:$0xff]
        %v244 = vld [vmem:[%s168 + $0x90] sm:$0xff]
        %v245 = vld [vmem:[%s168 + $0x98] sm:$0xff]
        %v246 = vld [vmem:[%s168 + $0xa0] sm:$0xff]
        %v247 = vld [vmem:[%s168 + $0xa8] sm:$0xff]
        %v248 = vld [vmem:[%s168 + $0xb0] sm:$0xff]
        %v249 = vld [vmem:[%s168 + $0xb8] sm:$0xff]
        %v250 = vld [vmem:[%s168 + $0xc0] sm:$0xff]
        %v251 = vld [vmem:[%s168 + $0xc8] sm:$0xff]
        %v252 = vld [vmem:[%s168 + $0xd0] sm:$0xff]
        %v253 = vld [vmem:[%s168 + $0xd8] sm:$0xff]
        %v254 = vld [vmem:[%s168 + $0xe0] sm:$0xff]
        %v255 = vld [vmem:[%s168 + $0xe8] sm:$0xff]
        %v256 = vld [vmem:[%s168 + $0xf0] sm:$0xff]
        %v257 = vld [vmem:[%s168 + $0xf8] sm:$0xff]
        %s258 = scalar_lea.vmem [#allocation2], 24
        %259 = vst.msk [vmem:[%s258 + $0x1] sm:$0xff] %vm170, %v226
        %260 = vst.msk [vmem:[%s258 + $0x9] sm:$0xff] %vm170, %v227
        %261 = vst.msk [vmem:[%s258 + $0x19] sm:$0xff] %vm170, %v228
        %262 = vst.msk [vmem:[%s258 + $0x21] sm:$0xff] %vm170, %v229
        %263 = vst.msk [vmem:[%s258 + $0x31] sm:$0xff] %vm170, %v230
        %264 = vst.msk [vmem:[%s258 + $0x39] sm:$0xff] %vm170, %v231
        %265 = vst.msk [vmem:[%s258 + $0x49] sm:$0xff] %vm170, %v232
        %266 = vst.msk [vmem:[%s258 + $0x51] sm:$0xff] %vm170, %v233
        %267 = vst.msk [vmem:[%s258 + $0x61] sm:$0xff] %vm170, %v234
        %268 = vst.msk [vmem:[%s258 + $0x69] sm:$0xff] %vm170, %v235
        %269 = vst.msk [vmem:[%s258 + $0x79] sm:$0xff] %vm170, %v236
        %270 = vst.msk [vmem:[%s258 + $0x81] sm:$0xff] %vm170, %v237
        %271 = vst.msk [vmem:[%s258 + $0x91] sm:$0xff] %vm170, %v238
        %272 = vst.msk [vmem:[%s258 + $0x99] sm:$0xff] %vm170, %v239
        %273 = vst.msk [vmem:[%s258 + $0xa9] sm:$0xff] %vm170, %v240
        %274 = vst.msk [vmem:[%s258 + $0xb1] sm:$0xff] %vm170, %v241
        %275 = vst.msk [vmem:[%s258 + $0xc1] sm:$0xff] %vm170, %v242
        %276 = vst.msk [vmem:[%s258 + $0xc9] sm:$0xff] %vm170, %v243
        %277 = vst.msk [vmem:[%s258 + $0xd9] sm:$0xff] %vm170, %v244
        %278 = vst.msk [vmem:[%s258 + $0xe1] sm:$0xff] %vm170, %v245
        %279 = vst.msk [vmem:[%s258 + $0xf1] sm:$0xff] %vm170, %v246
        %280 = vst.msk [vmem:[%s258 + $0xf9] sm:$0xff] %vm170, %v247
        %281 = vst.msk [vmem:[%s258 + $0x109] sm:$0xff] %vm170, %v248
        %282 = vst.msk [vmem:[%s258 + $0x111] sm:$0xff] %vm170, %v249
        %283 = vst.msk [vmem:[%s258 + $0x121] sm:$0xff] %vm170, %v250
        %284 = vst.msk [vmem:[%s258 + $0x129] sm:$0xff] %vm170, %v251
        %285 = vst.msk [vmem:[%s258 + $0x139] sm:$0xff] %vm170, %v252
        %286 = vst.msk [vmem:[%s258 + $0x141] sm:$0xff] %vm170, %v253
        %287 = vst.msk [vmem:[%s258 + $0x151] sm:$0xff] %vm170, %v254
        %288 = vst.msk [vmem:[%s258 + $0x159] sm:$0xff] %vm170, %v255
        %289 = vst.msk [vmem:[%s258 + $0x169] sm:$0xff] %vm170, %v256
        %290 = vst.msk [vmem:[%s258 + $0x171] sm:$0xff] %vm170, %v257
        %v291 = vld [vmem:[#allocation2] sm:$0xff]
        %v292 = vld [vmem:[#allocation2 + $0x8] sm:$0xff]
        %v293 = vld [vmem:[#allocation2 + $0x10] sm:$0x3]
        %v294 = vld [vmem:[#allocation2 + $0x18] sm:$0xff]
        %v295 = vld [vmem:[#allocation2 + $0x20] sm:$0xff]
        %v296 = vld [vmem:[#allocation2 + $0x28] sm:$0x3]
        %v297 = vld [vmem:[#allocation2 + $0x30] sm:$0xff]
        %v298 = vld [vmem:[#allocation2 + $0x38] sm:$0xff]
        %v299 = vld [vmem:[#allocation2 + $0x40] sm:$0x3]
        %v300 = vld [vmem:[#allocation2 + $0x48] sm:$0xff]
        %v301 = vld [vmem:[#allocation2 + $0x50] sm:$0xff]
        %v302 = vld [vmem:[#allocation2 + $0x58] sm:$0x3]
        %v303 = vld [vmem:[#allocation2 + $0x60] sm:$0xff]
        %v304 = vld [vmem:[#allocation2 + $0x68] sm:$0xff]
        %v305 = vld [vmem:[#allocation2 + $0x70] sm:$0x3]
        %v306 = vld [vmem:[#allocation2 + $0x78] sm:$0xff]
        %v307 = vld [vmem:[#allocation2 + $0x80] sm:$0xff]
        %v308 = vld [vmem:[#allocation2 + $0x88] sm:$0x3]
        %v309 = vld [vmem:[#allocation2 + $0x90] sm:$0xff]
        %v310 = vld [vmem:[#allocation2 + $0x98] sm:$0xff]
        %v311 = vld [vmem:[#allocation2 + $0xa0] sm:$0x3]
        %v312 = vld [vmem:[#allocation2 + $0xa8] sm:$0xff]
        %v313 = vld [vmem:[#allocation2 + $0xb0] sm:$0xff]
        %v314 = vld [vmem:[#allocation2 + $0xb8] sm:$0x3]
        %v315 = vld [vmem:[#allocation2 + $0xc0] sm:$0xff]
        %v316 = vld [vmem:[#allocation2 + $0xc8] sm:$0xff]
        %v317 = vld [vmem:[#allocation2 + $0xd0] sm:$0x3]
        %v318 = vld [vmem:[#allocation2 + $0xd8] sm:$0xff]
        %v319 = vld [vmem:[#allocation2 + $0xe0] sm:$0xff]
        %v320 = vld [vmem:[#allocation2 + $0xe8] sm:$0x3]
        %v321 = vld [vmem:[#allocation2 + $0xf0] sm:$0xff]
        %v322 = vld [vmem:[#allocation2 + $0xf8] sm:$0xff]
        %v323 = vld [vmem:[#allocation2 + $0x100] sm:$0x3]
        %v324 = vld [vmem:[#allocation2 + $0x108] sm:$0xff]
        %v325 = vld [vmem:[#allocation2 + $0x110] sm:$0xff]
        %v326 = vld [vmem:[#allocation2 + $0x118] sm:$0x3]
        %v327 = vld [vmem:[#allocation2 + $0x120] sm:$0xff]
        %v328 = vld [vmem:[#allocation2 + $0x128] sm:$0xff]
        %v329 = vld [vmem:[#allocation2 + $0x130] sm:$0x3]
        %v330 = vld [vmem:[#allocation2 + $0x138] sm:$0xff]
        %v331 = vld [vmem:[#allocation2 + $0x140] sm:$0xff]
        %v332 = vld [vmem:[#allocation2 + $0x148] sm:$0x3]
        %v333 = vld [vmem:[#allocation2 + $0x150] sm:$0xff]
        %v334 = vld [vmem:[#allocation2 + $0x158] sm:$0xff]
        %v335 = vld [vmem:[#allocation2 + $0x160] sm:$0x3]
        %v336 = vld [vmem:[#allocation2 + $0x168] sm:$0xff]
        %v337 = vld [vmem:[#allocation2 + $0x170] sm:$0xff]
        %v338 = vld [vmem:[#allocation2 + $0x178] sm:$0x3]
        %v339 = vld [vmem:[#allocation2 + $0x180] sm:$0xff]
        %v340 = vld [vmem:[#allocation2 + $0x188] sm:$0xff]
        %v341 = vld [vmem:[#allocation2 + $0x190] sm:$0x3]
        %v342 = vld [vmem:[#allocation2 + $0x198] sm:$0xff]
        %v343 = vld [vmem:[#allocation2 + $0x1a0] sm:$0xff]
        %v344 = vld [vmem:[#allocation2 + $0x1a8] sm:$0x3]
        %v345 = vpack.c.bf16 %v292, %v291
        %v346 = vpack.c.bf16 %v293, %v293
        %v347 = vpack.c.bf16 %v295, %v294
        %v348 = vpack.c.bf16 %v296, %v296
        %v349 = vpack.c.bf16 %v298, %v297
        %v350 = vpack.c.bf16 %v299, %v299
        %v351 = vpack.c.bf16 %v301, %v300
        %v352 = vpack.c.bf16 %v302, %v302
        %v353 = vpack.c.bf16 %v304, %v303
        %v354 = vpack.c.bf16 %v305, %v305
        %v355 = vpack.c.bf16 %v307, %v306
        %v356 = vpack.c.bf16 %v308, %v308
        %v357 = vpack.c.bf16 %v310, %v309
        %v358 = vpack.c.bf16 %v311, %v311
        %v359 = vpack.c.bf16 %v313, %v312
        %v360 = vpack.c.bf16 %v314, %v314
        %v361 = vpack.c.bf16 %v316, %v315
        %v362 = vpack.c.bf16 %v317, %v317
        %v363 = vpack.c.bf16 %v319, %v318
        %v364 = vpack.c.bf16 %v320, %v320
        %v365 = vpack.c.bf16 %v322, %v321
        %v366 = vpack.c.bf16 %v323, %v323
        %v367 = vpack.c.bf16 %v325, %v324
        %v368 = vpack.c.bf16 %v326, %v326
        %v369 = vpack.c.bf16 %v328, %v327
        %v370 = vpack.c.bf16 %v329, %v329
        %v371 = vpack.c.bf16 %v331, %v330
        %v372 = vpack.c.bf16 %v332, %v332
        %v373 = vpack.c.bf16 %v334, %v333
        %v374 = vpack.c.bf16 %v335, %v335
        %v375 = vpack.c.bf16 %v337, %v336
        %v376 = vpack.c.bf16 %v338, %v338
        %v377 = vpack.c.bf16 %v340, %v339
        %v378 = vpack.c.bf16 %v341, %v341
        %v379 = vpack.c.bf16 %v343, %v342
        %v380 = vpack.c.bf16 %v344, %v344
        %vm381 = vsmask.f32 7424
        %v383 = vshrl.u32 %v345, 16
        %v385 = vshll.u32 %v345, 16
        %v387 = vrot.slane %v385, 1
        %v388 = vor.u32 %v383, %v387
        %v390 = vshll.u32 %v346, 16
        %v392 = vrot.slane %v390, 1
        %v393 = vsel %vm381, %v388, %v392
        %v395 = vshrl.u32 %v347, 16
        %v397 = vshll.u32 %v347, 16
        %v399 = vrot.slane %v397, 1
        %v400 = vor.u32 %v395, %v399
        %v402 = vshll.u32 %v348, 16
        %v404 = vrot.slane %v402, 1
        %v405 = vsel %vm381, %v400, %v404
        %v407 = vshrl.u32 %v349, 16
        %v409 = vshll.u32 %v349, 16
        %v411 = vrot.slane %v409, 1
        %v412 = vor.u32 %v407, %v411
        %v414 = vshll.u32 %v350, 16
        %v416 = vrot.slane %v414, 1
        %v417 = vsel %vm381, %v412, %v416
        %v419 = vshrl.u32 %v351, 16
        %v421 = vshll.u32 %v351, 16
        %v423 = vrot.slane %v421, 1
        %v424 = vor.u32 %v419, %v423
        %v426 = vshll.u32 %v352, 16
        %v428 = vrot.slane %v426, 1
        %v429 = vsel %vm381, %v424, %v428
        %v431 = vshrl.u32 %v353, 16
        %v433 = vshll.u32 %v353, 16
        %v435 = vrot.slane %v433, 1
        %v436 = vor.u32 %v431, %v435
        %v438 = vshll.u32 %v354, 16
        %v440 = vrot.slane %v438, 1
        %v441 = vsel %vm381, %v436, %v440
        %v443 = vshrl.u32 %v355, 16
        %v445 = vshll.u32 %v355, 16
        %v447 = vrot.slane %v445, 1
        %v448 = vor.u32 %v443, %v447
        %v450 = vshll.u32 %v356, 16
        %v452 = vrot.slane %v450, 1
        %v453 = vsel %vm381, %v448, %v452
        %v455 = vshrl.u32 %v357, 16
        %v457 = vshll.u32 %v357, 16
        %v459 = vrot.slane %v457, 1
        %v460 = vor.u32 %v455, %v459
        %v462 = vshll.u32 %v358, 16
        %v464 = vrot.slane %v462, 1
        %v465 = vsel %vm381, %v460, %v464
        %v467 = vshrl.u32 %v359, 16
        %v469 = vshll.u32 %v359, 16
        %v471 = vrot.slane %v469, 1
        %v472 = vor.u32 %v467, %v471
        %v474 = vshll.u32 %v360, 16
        %v476 = vrot.slane %v474, 1
        %v477 = vsel %vm381, %v472, %v476
        %v479 = vshrl.u32 %v361, 16
        %v481 = vshll.u32 %v361, 16
        %v483 = vrot.slane %v481, 1
        %v484 = vor.u32 %v479, %v483
        %v486 = vshll.u32 %v362, 16
        %v488 = vrot.slane %v486, 1
        %v489 = vsel %vm381, %v484, %v488
        %v491 = vshrl.u32 %v363, 16
        %v493 = vshll.u32 %v363, 16
        %v495 = vrot.slane %v493, 1
        %v496 = vor.u32 %v491, %v495
        %v498 = vshll.u32 %v364, 16
        %v500 = vrot.slane %v498, 1
        %v501 = vsel %vm381, %v496, %v500
        %v503 = vshrl.u32 %v365, 16
        %v505 = vshll.u32 %v365, 16
        %v507 = vrot.slane %v505, 1
        %v508 = vor.u32 %v503, %v507
        %v510 = vshll.u32 %v366, 16
        %v512 = vrot.slane %v510, 1
        %v513 = vsel %vm381, %v508, %v512
        %v515 = vshrl.u32 %v367, 16
        %v517 = vshll.u32 %v367, 16
        %v519 = vrot.slane %v517, 1
        %v520 = vor.u32 %v515, %v519
        %v522 = vshll.u32 %v368, 16
        %v524 = vrot.slane %v522, 1
        %v525 = vsel %vm381, %v520, %v524
        %v527 = vshrl.u32 %v369, 16
        %v529 = vshll.u32 %v369, 16
        %v531 = vrot.slane %v529, 1
        %v532 = vor.u32 %v527, %v531
        %v534 = vshll.u32 %v370, 16
        %v536 = vrot.slane %v534, 1
        %v537 = vsel %vm381, %v532, %v536
        %v539 = vshrl.u32 %v371, 16
        %v541 = vshll.u32 %v371, 16
        %v543 = vrot.slane %v541, 1
        %v544 = vor.u32 %v539, %v543
        %v546 = vshll.u32 %v372, 16
        %v548 = vrot.slane %v546, 1
        %v549 = vsel %vm381, %v544, %v548
        %v551 = vshrl.u32 %v373, 16
        %v553 = vshll.u32 %v373, 16
        %v555 = vrot.slane %v553, 1
        %v556 = vor.u32 %v551, %v555
        %v558 = vshll.u32 %v374, 16
        %v560 = vrot.slane %v558, 1
        %v561 = vsel %vm381, %v556, %v560
        %v563 = vshrl.u32 %v375, 16
        %v565 = vshll.u32 %v375, 16
        %v567 = vrot.slane %v565, 1
        %v568 = vor.u32 %v563, %v567
        %v570 = vshll.u32 %v376, 16
        %v572 = vrot.slane %v570, 1
        %v573 = vsel %vm381, %v568, %v572
        %574 = vrot.lane.b32.xlu0 %v393, 4
        %v575 = vpop.permute.xlu0 %574
        %576 = vrot.lane.b32.xlu0 %v405, 4
        %v577 = vpop.permute.xlu0 %576
        %578 = vrot.lane.b32.xlu0 %v417, 4
        %v579 = vpop.permute.xlu0 %578
        %580 = vrot.lane.b32.xlu0 %v429, 4
        %v581 = vpop.permute.xlu0 %580
        %582 = vrot.lane.b32.xlu0 %v441, 4
        %v583 = vpop.permute.xlu0 %582
        %584 = vrot.lane.b32.xlu0 %v453, 4
        %v585 = vpop.permute.xlu0 %584
        %586 = vrot.lane.b32.xlu0 %v465, 4
        %v587 = vpop.permute.xlu0 %586
        %588 = vrot.lane.b32.xlu0 %v477, 4
        %v589 = vpop.permute.xlu0 %588
        %590 = vrot.lane.b32.xlu0 %v489, 4
        %v591 = vpop.permute.xlu0 %590
        %592 = vrot.lane.b32.xlu0 %v501, 4
        %v593 = vpop.permute.xlu0 %592
        %594 = vrot.lane.b32.xlu0 %v513, 4
        %v595 = vpop.permute.xlu0 %594
        %596 = vrot.lane.b32.xlu0 %v525, 4
        %v597 = vpop.permute.xlu0 %596
        %598 = vrot.lane.b32.xlu0 %v537, 4
        %v599 = vpop.permute.xlu0 %598
        %600 = vrot.lane.b32.xlu0 %v549, 4
        %v601 = vpop.permute.xlu0 %600
        %602 = vrot.lane.b32.xlu0 %v561, 4
        %v603 = vpop.permute.xlu0 %602
        %604 = vrot.lane.b32.xlu0 %v573, 4
        %v605 = vpop.permute.xlu0 %604
        %vm638 = vcmask 1046528
        %v639 = vrot.slane %v345, 1
        %v640 = vrot.slane %v346, 1
        %v641 = vsel %vm638, %v639, %v640
        %v642 = vrot.slane %v347, 1
        %v643 = vrot.slane %v348, 1
        %v644 = vsel %vm638, %v642, %v643
        %v645 = vrot.slane %v349, 1
        %v646 = vrot.slane %v350, 1
        %v647 = vsel %vm638, %v645, %v646
        %v648 = vrot.slane %v351, 1
        %v649 = vrot.slane %v352, 1
        %v650 = vsel %vm638, %v648, %v649
        %v651 = vrot.slane %v353, 1
        %v652 = vrot.slane %v354, 1
        %v653 = vsel %vm638, %v651, %v652
        %v654 = vrot.slane %v355, 1
        %v655 = vrot.slane %v356, 1
        %v656 = vsel %vm638, %v654, %v655
        %v657 = vrot.slane %v357, 1
        %v658 = vrot.slane %v358, 1
        %v659 = vsel %vm638, %v657, %v658
        %v660 = vrot.slane %v359, 1
        %v661 = vrot.slane %v360, 1
        %v662 = vsel %vm638, %v660, %v661
        %v663 = vrot.slane %v361, 1
        %v664 = vrot.slane %v362, 1
        %v665 = vsel %vm638, %v663, %v664
        %v666 = vrot.slane %v363, 1
        %v667 = vrot.slane %v364, 1
        %v668 = vsel %vm638, %v666, %v667
        %v669 = vrot.slane %v365, 1
        %v670 = vrot.slane %v366, 1
        %v671 = vsel %vm638, %v669, %v670
        %v672 = vrot.slane %v367, 1
        %v673 = vrot.slane %v368, 1
        %v674 = vsel %vm638, %v672, %v673
        %v675 = vrot.slane %v369, 1
        %v676 = vrot.slane %v370, 1
        %v677 = vsel %vm638, %v675, %v676
        %v678 = vrot.slane %v371, 1
        %v679 = vrot.slane %v372, 1
        %v680 = vsel %vm638, %v678, %v679
        %v681 = vrot.slane %v373, 1
        %v682 = vrot.slane %v374, 1
        %v683 = vsel %vm638, %v681, %v682
        %v684 = vrot.slane %v375, 1
        %v685 = vrot.slane %v376, 1
        %v686 = vsel %vm638, %v684, %v685
        %687 = vrot.lane.b32.xlu0 %v641, 8
        %v688 = vpop.permute.xlu0 %687
        %689 = vrot.lane.b32.xlu0 %v644, 8
        %v690 = vpop.permute.xlu0 %689
        %691 = vrot.lane.b32.xlu0 %v647, 8
        %v692 = vpop.permute.xlu0 %691
        %693 = vrot.lane.b32.xlu0 %v650, 8
        %v694 = vpop.permute.xlu0 %693
        %695 = vrot.lane.b32.xlu0 %v653, 8
        %v696 = vpop.permute.xlu0 %695
        %697 = vrot.lane.b32.xlu0 %v656, 8
        %v698 = vpop.permute.xlu0 %697
        %699 = vrot.lane.b32.xlu0 %v659, 8
        %v700 = vpop.permute.xlu0 %699
        %701 = vrot.lane.b32.xlu0 %v662, 8
        %v702 = vpop.permute.xlu0 %701
        %703 = vrot.lane.b32.xlu0 %v665, 8
        %v704 = vpop.permute.xlu0 %703
        %705 = vrot.lane.b32.xlu0 %v668, 8
        %v706 = vpop.permute.xlu0 %705
        %707 = vrot.lane.b32.xlu0 %v671, 8
        %v708 = vpop.permute.xlu0 %707
        %709 = vrot.lane.b32.xlu0 %v674, 8
        %v710 = vpop.permute.xlu0 %709
        %711 = vrot.lane.b32.xlu0 %v677, 8
        %v712 = vpop.permute.xlu0 %711
        %713 = vrot.lane.b32.xlu0 %v680, 8
        %v714 = vpop.permute.xlu0 %713
        %715 = vrot.lane.b32.xlu0 %v683, 8
        %v716 = vpop.permute.xlu0 %715
        %717 = vrot.lane.b32.xlu0 %v686, 8
        %v718 = vpop.permute.xlu0 %717
        %720 = vrot.lane.b32.xlu0 %v347, 12
        %v721 = vpop.permute.xlu0 %720
        %722 = vrot.lane.b32.xlu0 %v349, 12
        %v723 = vpop.permute.xlu0 %722
        %724 = vrot.lane.b32.xlu0 %v351, 12
        %v725 = vpop.permute.xlu0 %724
        %726 = vrot.lane.b32.xlu0 %v353, 12
        %v727 = vpop.permute.xlu0 %726
        %728 = vrot.lane.b32.xlu0 %v355, 12
        %v729 = vpop.permute.xlu0 %728
        %730 = vrot.lane.b32.xlu0 %v357, 12
        %v731 = vpop.permute.xlu0 %730
        %732 = vrot.lane.b32.xlu0 %v359, 12
        %v733 = vpop.permute.xlu0 %732
        %734 = vrot.lane.b32.xlu0 %v361, 12
        %v735 = vpop.permute.xlu0 %734
        %736 = vrot.lane.b32.xlu0 %v363, 12
        %v737 = vpop.permute.xlu0 %736
        %738 = vrot.lane.b32.xlu0 %v365, 12
        %v739 = vpop.permute.xlu0 %738
        %740 = vrot.lane.b32.xlu0 %v367, 12
        %v741 = vpop.permute.xlu0 %740
        %742 = vrot.lane.b32.xlu0 %v369, 12
        %v743 = vpop.permute.xlu0 %742
        %744 = vrot.lane.b32.xlu0 %v371, 12
        %v745 = vpop.permute.xlu0 %744
        %746 = vrot.lane.b32.xlu0 %v373, 12
        %v747 = vpop.permute.xlu0 %746
        %748 = vrot.lane.b32.xlu0 %v375, 12
        %v749 = vpop.permute.xlu0 %748
        %750 = vrot.lane.b32.xlu0 %v377, 12
        %v751 = vpop.permute.xlu0 %750
        %v753 = vshrl.u32 %v377, 16
        %v755 = vshll.u32 %v377, 16
        %v757 = vrot.slane %v755, 1
        %v758 = vor.u32 %v753, %v757
        %v760 = vshll.u32 %v378, 16
        %v762 = vrot.slane %v760, 1
        %v763 = vsel %vm381, %v758, %v762
        %764 = vrot.lane.b32.xlu0 %v405, 16
        %v765 = vpop.permute.xlu0 %764
        %766 = vrot.lane.b32.xlu0 %v417, 16
        %v767 = vpop.permute.xlu0 %766
        %768 = vrot.lane.b32.xlu0 %v429, 16
        %v769 = vpop.permute.xlu0 %768
        %770 = vrot.lane.b32.xlu0 %v441, 16
        %v771 = vpop.permute.xlu0 %770
        %772 = vrot.lane.b32.xlu0 %v453, 16
        %v773 = vpop.permute.xlu0 %772
        %774 = vrot.lane.b32.xlu0 %v465, 16
        %v775 = vpop.permute.xlu0 %774
        %776 = vrot.lane.b32.xlu0 %v477, 16
        %v777 = vpop.permute.xlu0 %776
        %778 = vrot.lane.b32.xlu0 %v489, 16
        %v779 = vpop.permute.xlu0 %778
        %780 = vrot.lane.b32.xlu0 %v501, 16
        %v781 = vpop.permute.xlu0 %780
        %782 = vrot.lane.b32.xlu0 %v513, 16
        %v783 = vpop.permute.xlu0 %782
        %784 = vrot.lane.b32.xlu0 %v525, 16
        %v785 = vpop.permute.xlu0 %784
        %786 = vrot.lane.b32.xlu0 %v537, 16
        %v787 = vpop.permute.xlu0 %786
        %788 = vrot.lane.b32.xlu0 %v549, 16
        %v789 = vpop.permute.xlu0 %788
        %790 = vrot.lane.b32.xlu0 %v561, 16
        %v791 = vpop.permute.xlu0 %790
        %792 = vrot.lane.b32.xlu0 %v573, 16
        %v793 = vpop.permute.xlu0 %792
        %794 = vrot.lane.b32.xlu0 %v763, 16
        %v795 = vpop.permute.xlu0 %794
        %v797 = vrot.slane %v377, 1
        %v798 = vrot.slane %v378, 1
        %v799 = vsel %vm638, %v797, %v798
        %800 = vrot.lane.b32.xlu0 %v644, 20
        %v801 = vpop.permute.xlu0 %800
        %802 = vrot.lane.b32.xlu0 %v647, 20
        %v803 = vpop.permute.xlu0 %802
        %804 = vrot.lane.b32.xlu0 %v650, 20
        %v805 = vpop.permute.xlu0 %804
        %806 = vrot.lane.b32.xlu0 %v653, 20
        %v807 = vpop.permute.xlu0 %806
        %808 = vrot.lane.b32.xlu0 %v656, 20
        %v809 = vpop.permute.xlu0 %808
        %810 = vrot.lane.b32.xlu0 %v659, 20
        %v811 = vpop.permute.xlu0 %810
        %812 = vrot.lane.b32.xlu0 %v662, 20
        %v813 = vpop.permute.xlu0 %812
        %814 = vrot.lane.b32.xlu0 %v665, 20
        %v815 = vpop.permute.xlu0 %814
        %816 = vrot.lane.b32.xlu0 %v668, 20
        %v817 = vpop.permute.xlu0 %816
        %818 = vrot.lane.b32.xlu0 %v671, 20
        %v819 = vpop.permute.xlu0 %818
        %820 = vrot.lane.b32.xlu0 %v674, 20
        %v821 = vpop.permute.xlu0 %820
        %822 = vrot.lane.b32.xlu0 %v677, 20
        %v823 = vpop.permute.xlu0 %822
        %824 = vrot.lane.b32.xlu0 %v680, 20
        %v825 = vpop.permute.xlu0 %824
        %826 = vrot.lane.b32.xlu0 %v683, 20
        %v827 = vpop.permute.xlu0 %826
        %828 = vrot.lane.b32.xlu0 %v686, 20
        %v829 = vpop.permute.xlu0 %828
        %830 = vrot.lane.b32.xlu0 %v799, 20
        %v831 = vpop.permute.xlu0 %830
        %833 = vrot.lane.b32.xlu0 %v349, 24
        %v834 = vpop.permute.xlu0 %833
        %835 = vrot.lane.b32.xlu0 %v351, 24
        %v836 = vpop.permute.xlu0 %835
        %837 = vrot.lane.b32.xlu0 %v353, 24
        %v838 = vpop.permute.xlu0 %837
        %839 = vrot.lane.b32.xlu0 %v355, 24
        %v840 = vpop.permute.xlu0 %839
        %841 = vrot.lane.b32.xlu0 %v357, 24
        %v842 = vpop.permute.xlu0 %841
        %843 = vrot.lane.b32.xlu0 %v359, 24
        %v844 = vpop.permute.xlu0 %843
        %845 = vrot.lane.b32.xlu0 %v361, 24
        %v846 = vpop.permute.xlu0 %845
        %847 = vrot.lane.b32.xlu0 %v363, 24
        %v848 = vpop.permute.xlu0 %847
        %849 = vrot.lane.b32.xlu0 %v365, 24
        %v850 = vpop.permute.xlu0 %849
        %851 = vrot.lane.b32.xlu0 %v367, 24
        %v852 = vpop.permute.xlu0 %851
        %853 = vrot.lane.b32.xlu0 %v369, 24
        %v854 = vpop.permute.xlu0 %853
        %855 = vrot.lane.b32.xlu0 %v371, 24
        %v856 = vpop.permute.xlu0 %855
        %857 = vrot.lane.b32.xlu0 %v373, 24
        %v858 = vpop.permute.xlu0 %857
        %859 = vrot.lane.b32.xlu0 %v375, 24
        %v860 = vpop.permute.xlu0 %859
        %861 = vrot.lane.b32.xlu0 %v377, 24
        %v862 = vpop.permute.xlu0 %861
        %863 = vrot.lane.b32.xlu0 %v379, 24
        %v864 = vpop.permute.xlu0 %863
        %v866 = vshrl.u32 %v379, 16
        %v868 = vshll.u32 %v379, 16
        %v870 = vrot.slane %v868, 1
        %v871 = vor.u32 %v866, %v870
        %v873 = vshll.u32 %v380, 16
        %v875 = vrot.slane %v873, 1
        %v876 = vsel %vm381, %v871, %v875
        %877 = vrot.lane.b32.xlu0 %v417, 28
        %v878 = vpop.permute.xlu0 %877
        %879 = vrot.lane.b32.xlu0 %v429, 28
        %v880 = vpop.permute.xlu0 %879
        %881 = vrot.lane.b32.xlu0 %v441, 28
        %v882 = vpop.permute.xlu0 %881
        %883 = vrot.lane.b32.xlu0 %v453, 28
        %v884 = vpop.permute.xlu0 %883
        %885 = vrot.lane.b32.xlu0 %v465, 28
        %v886 = vpop.permute.xlu0 %885
        %887 = vrot.lane.b32.xlu0 %v477, 28
        %v888 = vpop.permute.xlu0 %887
        %889 = vrot.lane.b32.xlu0 %v489, 28
        %v890 = vpop.permute.xlu0 %889
        %891 = vrot.lane.b32.xlu0 %v501, 28
        %v892 = vpop.permute.xlu0 %891
        %893 = vrot.lane.b32.xlu0 %v513, 28
        %v894 = vpop.permute.xlu0 %893
        %895 = vrot.lane.b32.xlu0 %v525, 28
        %v896 = vpop.permute.xlu0 %895
        %897 = vrot.lane.b32.xlu0 %v537, 28
        %v898 = vpop.permute.xlu0 %897
        %899 = vrot.lane.b32.xlu0 %v549, 28
        %v900 = vpop.permute.xlu0 %899
        %901 = vrot.lane.b32.xlu0 %v561, 28
        %v902 = vpop.permute.xlu0 %901
        %903 = vrot.lane.b32.xlu0 %v573, 28
        %v904 = vpop.permute.xlu0 %903
        %905 = vrot.lane.b32.xlu0 %v763, 28
        %v906 = vpop.permute.xlu0 %905
        %907 = vrot.lane.b32.xlu0 %v876, 28
        %v908 = vpop.permute.xlu0 %907
        %v910 = vrot.slane %v379, 1
        %v911 = vrot.slane %v380, 1
        %v912 = vsel %vm638, %v910, %v911
        %913 = vrot.lane.b32.xlu0 %v647, 32
        %v914 = vpop.permute.xlu0 %913
        %915 = vrot.lane.b32.xlu0 %v650, 32
        %v916 = vpop.permute.xlu0 %915
        %917 = vrot.lane.b32.xlu0 %v653, 32
        %v918 = vpop.permute.xlu0 %917
        %919 = vrot.lane.b32.xlu0 %v656, 32
        %v920 = vpop.permute.xlu0 %919
        %921 = vrot.lane.b32.xlu0 %v659, 32
        %v922 = vpop.permute.xlu0 %921
        %923 = vrot.lane.b32.xlu0 %v662, 32
        %v924 = vpop.permute.xlu0 %923
        %925 = vrot.lane.b32.xlu0 %v665, 32
        %v926 = vpop.permute.xlu0 %925
        %927 = vrot.lane.b32.xlu0 %v668, 32
        %v928 = vpop.permute.xlu0 %927
        %929 = vrot.lane.b32.xlu0 %v671, 32
        %v930 = vpop.permute.xlu0 %929
        %931 = vrot.lane.b32.xlu0 %v674, 32
        %v932 = vpop.permute.xlu0 %931
        %933 = vrot.lane.b32.xlu0 %v677, 32
        %v934 = vpop.permute.xlu0 %933
        %935 = vrot.lane.b32.xlu0 %v680, 32
        %v936 = vpop.permute.xlu0 %935
        %937 = vrot.lane.b32.xlu0 %v683, 32
        %v938 = vpop.permute.xlu0 %937
        %939 = vrot.lane.b32.xlu0 %v686, 32
        %v940 = vpop.permute.xlu0 %939
        %941 = vrot.lane.b32.xlu0 %v799, 32
        %v942 = vpop.permute.xlu0 %941
        %943 = vrot.lane.b32.xlu0 %v912, 32
        %v944 = vpop.permute.xlu0 %943
        %v946 = vsel %vm170, %v345, %v575
        %v948 = vsel %vm170, %v347, %v577
        %v950 = vsel %vm170, %v349, %v579
        %v952 = vsel %vm170, %v351, %v581
        %v954 = vsel %vm170, %v353, %v583
        %v956 = vsel %vm170, %v355, %v585
        %v958 = vsel %vm170, %v357, %v587
        %v960 = vsel %vm170, %v359, %v589
        %v962 = vsel %vm170, %v361, %v591
        %v964 = vsel %vm170, %v363, %v593
        %v966 = vsel %vm170, %v365, %v595
        %v968 = vsel %vm170, %v367, %v597
        %v970 = vsel %vm170, %v369, %v599
        %v972 = vsel %vm170, %v371, %v601
        %v974 = vsel %vm170, %v373, %v603
        %v976 = vsel %vm170, %v375, %v605
        %vm977 = vcmask 64512
        %v979 = vsel %vm977, %v946, %v688
        %v981 = vsel %vm977, %v948, %v690
        %v983 = vsel %vm977, %v950, %v692
        %v985 = vsel %vm977, %v952, %v694
        %v987 = vsel %vm977, %v954, %v696
        %v989 = vsel %vm977, %v956, %v698
        %v991 = vsel %vm977, %v958, %v700
        %v993 = vsel %vm977, %v960, %v702
        %v995 = vsel %vm977, %v962, %v704
        %v997 = vsel %vm977, %v964, %v706
        %v999 = vsel %vm977, %v966, %v708
        %v1001 = vsel %vm977, %v968, %v710
        %v1003 = vsel %vm977, %v970, %v712
        %v1005 = vsel %vm977, %v972, %v714
        %v1007 = vsel %vm977, %v974, %v716
        %v1009 = vsel %vm977, %v976, %v718
        %vm1010 = vcmask 97280
        %v1012 = vsel %vm1010, %v979, %v721
        %v1014 = vsel %vm1010, %v981, %v723
        %v1016 = vsel %vm1010, %v983, %v725
        %v1018 = vsel %vm1010, %v985, %v727
        %v1020 = vsel %vm1010, %v987, %v729
        %v1022 = vsel %vm1010, %v989, %v731
        %v1024 = vsel %vm1010, %v991, %v733
        %v1026 = vsel %vm1010, %v993, %v735
        %v1028 = vsel %vm1010, %v995, %v737
        %v1030 = vsel %vm1010, %v997, %v739
        %v1032 = vsel %vm1010, %v999, %v741
        %v1034 = vsel %vm1010, %v1001, %v743
        %v1036 = vsel %vm1010, %v1003, %v745
        %v1038 = vsel %vm1010, %v1005, %v747
        %v1040 = vsel %vm1010, %v1007, %v749
        %v1042 = vsel %vm1010, %v1009, %v751
        %vm1043 = vcmask 130048
        %v1045 = vsel %vm1043, %v1012, %v765
        %v1047 = vsel %vm1043, %v1014, %v767
        %v1049 = vsel %vm1043, %v1016, %v769
        %v1051 = vsel %vm1043, %v1018, %v771
        %v1053 = vsel %vm1043, %v1020, %v773
        %v1055 = vsel %vm1043, %v1022, %v775
        %v1057 = vsel %vm1043, %v1024, %v777
        %v1059 = vsel %vm1043, %v1026, %v779
        %v1061 = vsel %vm1043, %v1028, %v781
        %v1063 = vsel %vm1043, %v1030, %v783
        %v1065 = vsel %vm1043, %v1032, %v785
        %v1067 = vsel %vm1043, %v1034, %v787
        %v1069 = vsel %vm1043, %v1036, %v789
        %v1071 = vsel %vm1043, %v1038, %v791
        %v1073 = vsel %vm1043, %v1040, %v793
        %v1075 = vsel %vm1043, %v1042, %v795
        %vm1076 = vcmask 162816
        %v1078 = vsel %vm1076, %v1045, %v801
        %v1080 = vsel %vm1076, %v1047, %v803
        %v1082 = vsel %vm1076, %v1049, %v805
        %v1084 = vsel %vm1076, %v1051, %v807
        %v1086 = vsel %vm1076, %v1053, %v809
        %v1088 = vsel %vm1076, %v1055, %v811
        %v1090 = vsel %vm1076, %v1057, %v813
        %v1092 = vsel %vm1076, %v1059, %v815
        %v1094 = vsel %vm1076, %v1061, %v817
        %v1096 = vsel %vm1076, %v1063, %v819
        %v1098 = vsel %vm1076, %v1065, %v821
        %v1100 = vsel %vm1076, %v1067, %v823
        %v1102 = vsel %vm1076, %v1069, %v825
        %v1104 = vsel %vm1076, %v1071, %v827
        %v1106 = vsel %vm1076, %v1073, %v829
        %v1108 = vsel %vm1076, %v1075, %v831
        %vm1109 = vcmask 195584
        %v1111 = vsel %vm1109, %v1078, %v834
        %v1113 = vsel %vm1109, %v1080, %v836
        %v1115 = vsel %vm1109, %v1082, %v838
        %v1117 = vsel %vm1109, %v1084, %v840
        %v1119 = vsel %vm1109, %v1086, %v842
        %v1121 = vsel %vm1109, %v1088, %v844
        %v1123 = vsel %vm1109, %v1090, %v846
        %v1125 = vsel %vm1109, %v1092, %v848
        %v1127 = vsel %vm1109, %v1094, %v850
        %v1129 = vsel %vm1109, %v1096, %v852
        %v1131 = vsel %vm1109, %v1098, %v854
        %v1133 = vsel %vm1109, %v1100, %v856
        %v1135 = vsel %vm1109, %v1102, %v858
        %v1137 = vsel %vm1109, %v1104, %v860
        %v1139 = vsel %vm1109, %v1106, %v862
        %v1141 = vsel %vm1109, %v1108, %v864
        %vm1142 = vcmask 228352
        %v1144 = vsel %vm1142, %v1111, %v878
        %v1146 = vsel %vm1142, %v1113, %v880
        %v1148 = vsel %vm1142, %v1115, %v882
        %v1150 = vsel %vm1142, %v1117, %v884
        %v1152 = vsel %vm1142, %v1119, %v886
        %v1154 = vsel %vm1142, %v1121, %v888
        %v1156 = vsel %vm1142, %v1123, %v890
        %v1158 = vsel %vm1142, %v1125, %v892
        %v1160 = vsel %vm1142, %v1127, %v894
        %v1162 = vsel %vm1142, %v1129, %v896
        %v1164 = vsel %vm1142, %v1131, %v898
        %v1166 = vsel %vm1142, %v1133, %v900
        %v1168 = vsel %vm1142, %v1135, %v902
        %v1170 = vsel %vm1142, %v1137, %v904
        %v1172 = vsel %vm1142, %v1139, %v906
        %v1174 = vsel %vm1142, %v1141, %v908
        %vm1175 = vcmask 261120
        %v1177 = vsel %vm1175, %v1144, %v914
        %v1179 = vsel %vm1175, %v1146, %v916
        %v1181 = vsel %vm1175, %v1148, %v918
        %v1183 = vsel %vm1175, %v1150, %v920
        %v1185 = vsel %vm1175, %v1152, %v922
        %v1187 = vsel %vm1175, %v1154, %v924
        %v1189 = vsel %vm1175, %v1156, %v926
        %v1191 = vsel %vm1175, %v1158, %v928
        %v1193 = vsel %vm1175, %v1160, %v930
        %v1195 = vsel %vm1175, %v1162, %v932
        %v1197 = vsel %vm1175, %v1164, %v934
        %v1199 = vsel %vm1175, %v1166, %v936
        %v1201 = vsel %vm1175, %v1168, %v938
        %v1203 = vsel %vm1175, %v1170, %v940
        %v1205 = vsel %vm1175, %v1172, %v942
        %v1207 = vsel %vm1175, %v1174, %v944
        %v1208 = vld [vmem:[%s1] sm:$0xf]
        %v1209 = vld [vmem:[%s1 + $0x4] sm:$0xf]
        %v1210 = vld [vmem:[%s1 + $0x8] sm:$0xf]
        %v1211 = vld [vmem:[%s1 + $0xc] sm:$0xf]
        %v1212 = vld [vmem:[%s1 + $0x10] sm:$0x3]
        %v1213 = vld [vmem:[%s2] sm:$0x1]
        %v1215 = vlaneseq
        %v1216 = vshrl.u32 %v1215, 7
        %v1217 = vsub.s32 0, %v1216
        %v1218 = vrot.slane %v1213, %v1217
        %v1225 = vunpack.c.l.b16 %v1208
        %v1226 = vunpack.c.l.b16 %v1209
        %v1227 = vunpack.c.l.b16 %v1210
        %v1228 = vunpack.c.l.b16 %v1211
        %v1229 = vunpack.c.l.b16 %v1212
        %v1230 = vpack.c.b16 %v1226, %v1225
        %v1231 = vpack.c.b16 %v1228, %v1227
        %v1232 = vpack.c.b16 %v1229, %v1229
        %vm1235 = vcmask 293888
        %v1236 = vsel %vm1235, %v1177, 0
        %v1238 = vsel %vm1235, %v1179, 0
        %v1240 = vsel %vm1235, %v1181, 0
        %v1242 = vsel %vm1235, %v1183, 0
        %v1244 = vsel %vm1235, %v1185, 0
        %v1246 = vsel %vm1235, %v1187, 0
        %v1248 = vsel %vm1235, %v1189, 0
        %v1250 = vsel %vm1235, %v1191, 0
        %v1252 = vsel %vm1235, %v1193, 0
        %v1254 = vsel %vm1235, %v1195, 0
        %v1256 = vsel %vm1235, %v1197, 0
        %v1258 = vsel %vm1235, %v1199, 0
        %v1260 = vsel %vm1235, %v1201, 0
        %v1262 = vsel %vm1235, %v1203, 0
        %v1264 = vsel %vm1235, %v1205, 0
        %v1266 = vsel %vm1235, %v1207, 0
        %vm1268 = vcmask 1041408
        %v1270 = vsel %vm1268, %v1232, 0
        %1272 = vmatprep.subr.bf16.mxu0 0
        %1273 = vmatpush1.bf16.msra.mxu0 %v1230
        %1274 = vmatprep.subr.bf16.mxu0 0
        %1275 = vmatpush1.bf16.msra.mxu0 %v1231
        %1276 = vmatprep.subr.bf16.mxu0 0
        %1277 = vmatpush1.bf16.msra.mxu0 %v1270
        %1278 = vmatprep.subr.bf16.mxu0 0
        %1279 = vmatpush1.bf16.msra.mxu0 0
        %1280 = vmatprep.subr.bf16.mxu0 0
        %1281 = vmatpush1.bf16.msra.mxu0 0
        %1282 = vmatprep.subr.bf16.mxu0 0
        %1283 = vmatpush1.bf16.msra.mxu0 0
        %1284 = vmatprep.subr.bf16.mxu0 0
        %1285 = vmatpush1.bf16.msra.mxu0 0
        %1286 = vmatprep.subr.bf16.mxu0 0
        %1287 = vmatpush1.bf16.msra.mxu0 0
        %1288 = vmatprep.subr.bf16.mxu0 0
        %1289 = vmatpush1.bf16.msra.mxu0 0
        %1290 = vmatprep.subr.bf16.mxu0 0
        %1291 = vmatpush1.bf16.msra.mxu0 0
        %1292 = vmatprep.subr.bf16.mxu0 0
        %1293 = vmatpush1.bf16.msra.mxu0 0
        %1294 = vmatprep.subr.bf16.mxu0 0
        %1295 = vmatpush1.bf16.msra.mxu0 0
        %1296 = vmatprep.subr.bf16.mxu0 0
        %1297 = vmatpush1.bf16.msra.mxu0 0
        %1298 = vmatprep.subr.bf16.mxu0 0
        %1299 = vmatpush1.bf16.msra.mxu0 0
        %1300 = vmatprep.subr.bf16.mxu0 0
        %1301 = vmatpush1.bf16.msra.mxu0 0
        %1302 = vmatprep.subr.bf16.mxu0 0
        %1303 = vmatpush1.bf16.msra.mxu0 0
        %1304 = vmatprep.mubr.bf16.mxu0 0
        %1305 = vmatmul.mubr.bf16.gmra.mrb[0].mxu0 %v1236
        %v1306 = vpop.f32.mrb[0].mxu0
        %v1307 = vadd.f32 %v1218, %v1306
        %v1308 = vpop.f32.mrb[0].mxu0
        %v1309 = vpop.f32.mrb[0].mxu0
        %v1310 = vadd.f32 %v1218, %v1309
        %v1311 = vpop.f32.mrb[0].mxu0
        %1312 = vmatprep.mubr.bf16.mxu0 0
        %1313 = vmatmul.mubr.bf16.gmra.mrb[0].mxu0 %v1238
        %v1314 = vpop.f32.mrb[0].mxu0
        %v1315 = vadd.f32 %v1218, %v1314
        %v1316 = vpop.f32.mrb[0].mxu0
        %v1317 = vpop.f32.mrb[0].mxu0
        %v1318 = vadd.f32 %v1218, %v1317
        %v1319 = vpop.f32.mrb[0].mxu0
        %1320 = vmatprep.mubr.bf16.mxu0 0
        %1321 = vmatmul.mubr.bf16.gmra.mrb[0].mxu0 %v1240
        %v1322 = vpop.f32.mrb[0].mxu0
        %v1323 = vadd.f32 %v1218, %v1322
        %v1324 = vpop.f32.mrb[0].mxu0
        %v1325 = vpop.f32.mrb[0].mxu0
        %v1326 = vadd.f32 %v1218, %v1325
        %v1327 = vpop.f32.mrb[0].mxu0
        %1328 = vmatprep.mubr.bf16.mxu0 0
        %1329 = vmatmul.mubr.bf16.gmra.mrb[0].mxu0 %v1242
        %v1330 = vpop.f32.mrb[0].mxu0
        %v1331 = vadd.f32 %v1218, %v1330
        %v1332 = vpop.f32.mrb[0].mxu0
        %v1333 = vpop.f32.mrb[0].mxu0
        %v1334 = vadd.f32 %v1218, %v1333
        %v1335 = vpop.f32.mrb[0].mxu0
        %1336 = vmatprep.mubr.bf16.mxu0 0
        %1337 = vmatmul.mubr.bf16.gmra.mrb[0].mxu0 %v1244
        %v1338 = vpop.f32.mrb[0].mxu0
        %v1339 = vadd.f32 %v1218, %v1338
        %v1340 = vpop.f32.mrb[0].mxu0
        %v1341 = vpop.f32.mrb[0].mxu0
        %v1342 = vadd.f32 %v1218, %v1341
        %v1343 = vpop.f32.mrb[0].mxu0
        %1344 = vmatprep.mubr.bf16.mxu0 0
        %1345 = vmatmul.mubr.bf16.gmra.mrb[0].mxu0 %v1246
        %v1346 = vpop.f32.mrb[0].mxu0
        %v1347 = vadd.f32 %v1218, %v1346
        %v1348 = vpop.f32.mrb[0].mxu0
        %v1349 = vpop.f32.mrb[0].mxu0
        %v1350 = vadd.f32 %v1218, %v1349
        %v1351 = vpop.f32.mrb[0].mxu0
        %1352 = vmatprep.mubr.bf16.mxu0 0
        %1353 = vmatmul.mubr.bf16.gmra.mrb[0].mxu0 %v1248
        %v1354 = vpop.f32.mrb[0].mxu0
        %v1355 = vadd.f32 %v1218, %v1354
        %v1356 = vpop.f32.mrb[0].mxu0
        %v1357 = vpop.f32.mrb[0].mxu0
        %v1358 = vadd.f32 %v1218, %v1357
        %v1359 = vpop.f32.mrb[0].mxu0
        %1360 = vmatprep.mubr.bf16.mxu0 0
        %1361 = vmatmul.mubr.bf16.gmra.mrb[0].mxu0 %v1250
        %v1362 = vpop.f32.mrb[0].mxu0
        %v1363 = vadd.f32 %v1218, %v1362
        %v1364 = vpop.f32.mrb[0].mxu0
        %v1365 = vpop.f32.mrb[0].mxu0
        %v1366 = vadd.f32 %v1218, %v1365
        %v1367 = vpop.f32.mrb[0].mxu0
        %1368 = vmatprep.mubr.bf16.mxu0 0
        %1369 = vmatmul.mubr.bf16.gmra.mrb[0].mxu0 %v1252
        %v1370 = vpop.f32.mrb[0].mxu0
        %v1371 = vadd.f32 %v1218, %v1370
        %v1372 = vpop.f32.mrb[0].mxu0
        %v1373 = vpop.f32.mrb[0].mxu0
        %v1374 = vadd.f32 %v1218, %v1373
        %v1375 = vpop.f32.mrb[0].mxu0
        %1376 = vmatprep.mubr.bf16.mxu0 0
        %1377 = vmatmul.mubr.bf16.gmra.mrb[0].mxu0 %v1254
        %v1378 = vpop.f32.mrb[0].mxu0
        %v1379 = vadd.f32 %v1218, %v1378
        %v1380 = vpop.f32.mrb[0].mxu0
        %v1381 = vpop.f32.mrb[0].mxu0
        %v1382 = vadd.f32 %v1218, %v1381
        %v1383 = vpop.f32.mrb[0].mxu0
        %1384 = vmatprep.mubr.bf16.mxu0 0
        %1385 = vmatmul.mubr.bf16.gmra.mrb[0].mxu0 %v1256
        %v1386 = vpop.f32.mrb[0].mxu0
        %v1387 = vadd.f32 %v1218, %v1386
        %v1388 = vpop.f32.mrb[0].mxu0
        %v1389 = vpop.f32.mrb[0].mxu0
        %v1390 = vadd.f32 %v1218, %v1389
        %v1391 = vpop.f32.mrb[0].mxu0
        %1392 = vmatprep.mubr.bf16.mxu0 0
        %1393 = vmatmul.mubr.bf16.gmra.mrb[0].mxu0 %v1258
        %v1394 = vpop.f32.mrb[0].mxu0
        %v1395 = vadd.f32 %v1218, %v1394
        %v1396 = vpop.f32.mrb[0].mxu0
        %v1397 = vpop.f32.mrb[0].mxu0
        %v1398 = vadd.f32 %v1218, %v1397
        %v1399 = vpop.f32.mrb[0].mxu0
        %1400 = vmatprep.mubr.bf16.mxu0 0
        %1401 = vmatmul.mubr.bf16.gmra.mrb[0].mxu0 %v1260
        %v1402 = vpop.f32.mrb[0].mxu0
        %v1403 = vadd.f32 %v1218, %v1402
        %v1404 = vpop.f32.mrb[0].mxu0
        %v1405 = vpop.f32.mrb[0].mxu0
        %v1406 = vadd.f32 %v1218, %v1405
        %v1407 = vpop.f32.mrb[0].mxu0
        %1408 = vmatprep.mubr.bf16.mxu0 0
        %1409 = vmatmul.mubr.bf16.gmra.mrb[0].mxu0 %v1262
        %v1410 = vpop.f32.mrb[0].mxu0
        %v1411 = vadd.f32 %v1218, %v1410
        %v1412 = vpop.f32.mrb[0].mxu0
        %v1413 = vpop.f32.mrb[0].mxu0
        %v1414 = vadd.f32 %v1218, %v1413
        %v1415 = vpop.f32.mrb[0].mxu0
        %1416 = vmatprep.mubr.bf16.mxu0 0
        %1417 = vmatmul.mubr.bf16.gmra.mrb[0].mxu0 %v1264
        %v1418 = vpop.f32.mrb[0].mxu0
        %v1419 = vadd.f32 %v1218, %v1418
        %v1420 = vpop.f32.mrb[0].mxu0
        %v1421 = vpop.f32.mrb[0].mxu0
        %v1422 = vadd.f32 %v1218, %v1421
        %v1423 = vpop.f32.mrb[0].mxu0
        %1424 = vmatprep.mubr.bf16.mxu0 0
        %1425 = vmatmul.mubr.bf16.gmra.mrb[0].mxu0 %v1266
        %v1426 = vpop.f32.mrb[0].mxu0
        %v1427 = vadd.f32 %v1218, %v1426
        %v1428 = vpop.f32.mrb[0].mxu0
        %v1429 = vpop.f32.mrb[0].mxu0
        %v1430 = vadd.f32 %v1218, %v1429
        %v1431 = vpop.f32.mrb[0].mxu0
        %1432 = vdwg.mxu0
        %v1433 = vmax.f32 %v1307, 0.0
        %v1434 = vmax.f32 %v1310, 0.0
        %v1435 = vmax.f32 %v1315, 0.0
        %v1436 = vmax.f32 %v1318, 0.0
        %v1437 = vmax.f32 %v1323, 0.0
        %v1438 = vmax.f32 %v1326, 0.0
        %v1439 = vmax.f32 %v1331, 0.0
        %v1440 = vmax.f32 %v1334, 0.0
        %v1441 = vmax.f32 %v1339, 0.0
        %v1442 = vmax.f32 %v1342, 0.0
        %v1443 = vmax.f32 %v1347, 0.0
        %v1444 = vmax.f32 %v1350, 0.0
        %v1445 = vmax.f32 %v1355, 0.0
        %v1446 = vmax.f32 %v1358, 0.0
        %v1447 = vmax.f32 %v1363, 0.0
        %v1448 = vmax.f32 %v1366, 0.0
        %v1449 = vmax.f32 %v1371, 0.0
        %v1450 = vmax.f32 %v1374, 0.0
        %v1451 = vmax.f32 %v1379, 0.0
        %v1452 = vmax.f32 %v1382, 0.0
        %v1453 = vmax.f32 %v1387, 0.0
        %v1454 = vmax.f32 %v1390, 0.0
        %v1455 = vmax.f32 %v1395, 0.0
        %v1456 = vmax.f32 %v1398, 0.0
        %v1457 = vmax.f32 %v1403, 0.0
        %v1458 = vmax.f32 %v1406, 0.0
        %v1459 = vmax.f32 %v1411, 0.0
        %v1460 = vmax.f32 %v1414, 0.0
        %v1461 = vmax.f32 %v1419, 0.0
        %v1462 = vmax.f32 %v1422, 0.0
        %v1463 = vmax.f32 %v1427, 0.0
        %v1464 = vmax.f32 %v1430, 0.0
        %1465 = vst [vmem:[%s163] sm:$0xff] %v1433
        %1466 = vst [vmem:[%s163 + $0x8] sm:$0xff] %v1434
        %1467 = vst [vmem:[%s163 + $0x10] sm:$0xff] %v1435
        %1468 = vst [vmem:[%s163 + $0x18] sm:$0xff] %v1436
        %1469 = vst [vmem:[%s163 + $0x20] sm:$0xff] %v1437
        %1470 = vst [vmem:[%s163 + $0x28] sm:$0xff] %v1438
        %1471 = vst [vmem:[%s163 + $0x30] sm:$0xff] %v1439
        %1472 = vst [vmem:[%s163 + $0x38] sm:$0xff] %v1440
        %1473 = vst [vmem:[%s163 + $0x40] sm:$0xff] %v1441
        %1474 = vst [vmem:[%s163 + $0x48] sm:$0xff] %v1442
        %1475 = vst [vmem:[%s163 + $0x50] sm:$0xff] %v1443
        %1476 = vst [vmem:[%s163 + $0x58] sm:$0xff] %v1444
        %1477 = vst [vmem:[%s163 + $0x60] sm:$0xff] %v1445
        %1478 = vst [vmem:[%s163 + $0x68] sm:$0xff] %v1446
        %1479 = vst [vmem:[%s163 + $0x70] sm:$0xff] %v1447
        %1480 = vst [vmem:[%s163 + $0x78] sm:$0xff] %v1448
        %1481 = vst [vmem:[%s163 + $0x80] sm:$0xff] %v1449
        %1482 = vst [vmem:[%s163 + $0x88] sm:$0xff] %v1450
        %1483 = vst [vmem:[%s163 + $0x90] sm:$0xff] %v1451
        %1484 = vst [vmem:[%s163 + $0x98] sm:$0xff] %v1452
        %1485 = vst [vmem:[%s163 + $0xa0] sm:$0xff] %v1453
        %1486 = vst [vmem:[%s163 + $0xa8] sm:$0xff] %v1454
        %1487 = vst [vmem:[%s163 + $0xb0] sm:$0xff] %v1455
        %1488 = vst [vmem:[%s163 + $0xb8] sm:$0xff] %v1456
        %1489 = vst [vmem:[%s163 + $0xc0] sm:$0xff] %v1457
        %1490 = vst [vmem:[%s163 + $0xc8] sm:$0xff] %v1458
        %1491 = vst [vmem:[%s163 + $0xd0] sm:$0xff] %v1459
        %1492 = vst [vmem:[%s163 + $0xd8] sm:$0xff] %v1460
        %1493 = vst [vmem:[%s163 + $0xe0] sm:$0xff] %v1461
        %1494 = vst [vmem:[%s163 + $0xe8] sm:$0xff] %v1462
        %1495 = vst [vmem:[%s163 + $0xf0] sm:$0xff] %v1463
        %1496 = vst [vmem:[%s163 + $0xf8] sm:$0xff] %v1464
        %s1497 = sand.u32 %s93, 1
        %s1498 = scalar_lea.sflag [#allocation4], %s1497
        %s1499 = sand.u32 %s93, 1
        %s1500 = smul.addr %s1499, 256
        %s1501 = scalar_lea.vmem [#allocation3], %s1500
        // Predicated region
        $region33: #{tpu_custom_call.1} parent=31 // pred_check
          %p1502 = pneg %p103
        $region34: #{tpu_custom_call.1} parent=31 // pred_check_branch
          %1504 = sbr.rel (%p1502) target = $region36
        $region35: #{tpu_custom_call.1} parent=31 // pred_region
          %s1506 = ssub.s32 4096, 4096
          %1507 = vsyncadd %s1498, %s1506
          %s1508 = smul.addr %s17, 32
          %s1509 = smul.addr %s1508, 128
          %s1510 = scalar_lea.hbm %s3, %s1509
          %s1511 = sshll.u32 %s1501, 4
          %s1512 = int_to_ptr.vmem [resolvable:$true] %s1511
          %1517 = dma.vmem_to_hbm [thread:$0]  %s1512, 4096, %s1510, %s1498, 128, 128, 8
        $region36: #{tpu_custom_call.1} parent=31 // pred_fallthru
          _
      $region32: #{tpu_custom_call.1} parent=5 // pred_fallthru
        _
      %p1518 = scmp.le.s32.totalorder 2, %s12
      // Predicated region
      $region37: #{tpu_custom_call.1} parent=5 // pred_check
        %p1519 = pneg %p1518
      $region38: #{tpu_custom_call.1} parent=5 // pred_check_branch
        %1521 = sbr.rel (%p1519) target = $region40
      $region39: #{tpu_custom_call.1} parent=5 // pred_region
        %s1522 = ssub.s32 %s12, 2
        // Predicated region
        $region41: #{tpu_custom_call.1} parent=39 // pred_check
          %p1523 = pneg %p109
        $region42: #{tpu_custom_call.1} parent=39 // pred_check_branch
          %1525 = sbr.rel (%p1523) target = $region44
        $region43: #{tpu_custom_call.1} parent=39 // pred_region
          %s1526 = sand.u32 %s94, 1
          %s1527 = scalar_lea.sflag [#allocation4], %s1526
          %s1528 = sand.u32 %s94, 1
          %s1529 = smul.addr %s1528, 256
          %s1530 = scalar_lea.vmem [#allocation3], %s1529
          %1531 = dma.done %s1527, 4096
        $region44: #{tpu_custom_call.1} parent=39 // pred_fallthru
          _
      $region40: #{tpu_custom_call.1} parent=5 // pred_fallthru
        _
    $region6: #{tpu_custom_call.1} parent=1 // loop_footer
      %s16 = sadd.s32 1, %s12
    $region7: #{tpu_custom_call.1} parent=1 // loop_footer_branch
      %11 = sbr.rel target = $region3
    $region8: #{tpu_custom_call.1} parent=1 // loop_exit
      _
    %1532 = vsyncpa [#allocation4], 1
    %s1533 = scalar_lea.sflag [#allocation4], 1
    %1534 = vsyncpa %s1533, 1

</llo_original>
